<compile_context>
chip_gen: v6e
topology: v6e:2x2x1
jax: 0.10.0
libtpu: 0.0.40
codegen_flags: <defaults>
</compile_context>

<pallas_src>
import math

import jax
import jax.numpy as jnp
import numpy as np
from jax.experimental import pallas as pl
from jax.experimental.pallas import tpu as pltpu


def make_mha_kernel(n_head, d_k, d_v, d_model, len_q, len_k, block_b,
                    return_attn=True, eps=1e-5):
    NEG = -1e30  # finite "-inf": fully masked query rows give uniform probs, not NaN
    Bt = block_b
    M_q = Bt * len_q
    M_k = Bt * len_k

    def kernel(q_ref, k_ref, v_ref, mask_ref,
               wq_ref, bq_ref, wk_ref, bk_ref, wv_ref, bv_ref,
               wfc_ref, bfc_ref, gamma_ref, beta_ref,
               out_ref, *rest):
        attn_ref = rest[0] if return_attn else None

        xq = q_ref[...]                                    # (Bt, len_q, d_model) f32
        xq_flat = xq.reshape(M_q, d_model)                 # kept f32 for the residual

        # bf16 MXU operands, cast ONCE (no per-head recasts).
        xq_b = xq_flat.astype(jnp.bfloat16)
        xk_b = k_ref[...].reshape(M_k, d_model).astype(jnp.bfloat16)
        xv_b = v_ref[...].reshape(M_k, d_model).astype(jnp.bfloat16)

        # Fused Q/K/V projections with the batch tile folded into M.
        # wq/bq arrive pre-scaled by 1/sqrt(d_k) -> no per-score scaling here.
        Q = jnp.dot(xq_b, wq_ref[...], preferred_element_type=jnp.float32) + bq_ref[...]
        K = jnp.dot(xk_b, wk_ref[...], preferred_element_type=jnp.float32) + bk_ref[...]
        V = jnp.dot(xv_b, wv_ref[...], preferred_element_type=jnp.float32) + bv_ref[...]

        # Cast to bf16 ONCE before the head loop (halves vreg pressure inside).
        Qb = Q.astype(jnp.bfloat16).reshape(Bt, len_q, n_head * d_k)
        Kb = K.astype(jnp.bfloat16).reshape(Bt, len_k, n_head * d_k)
        Vb = V.astype(jnp.bfloat16).reshape(Bt, len_k, n_head * d_v)

        # Additive mask bias, hoisted out of the head loop (one select total).
        masked = mask_ref[...].astype(jnp.int32) > 0       # (Bt, len_q, len_k)
        mask_bias = jnp.where(masked, NEG, 0.0).astype(jnp.float32)

        W_fc = wfc_ref[...]                                # (n_head*d_v, d_model) bf16

        # Accumulate the output projection per head: no lane-axis head concat.
        o = jnp.zeros((M_q, d_model), jnp.float32)

        for h in range(n_head):                            # small & static -> unrolled
            qh = Qb[:, :, h * d_k:(h + 1) * d_k]           # (Bt, len_q, d_k) bf16
            kh = Kb[:, :, h * d_k:(h + 1) * d_k]           # (Bt, len_k, d_k) bf16
            vh = Vb[:, :, h * d_v:(h + 1) * d_v]           # (Bt, len_k, d_v) bf16

            # Batched q @ k^T over the batch-tile axis, contracting last dims
            # (no materialized transpose); f32 accumulation.
            s = jnp.einsum('bqd,bkd->bqk', qh, kh,
                           preferred_element_type=jnp.float32) + mask_bias

            # softmax over the key axis (f32 VPU/EUP math)
            s_max = jnp.max(s, axis=-1, keepdims=True)
            p_un = jnp.exp(s - s_max)
            denom = jnp.sum(p_un, axis=-1, keepdims=True)
            # approx=True uses the EUP reciprocal: rows sum to 1 +/- ~1e-3.
            p = p_un * pl.reciprocal(denom, approx=True)

            # attention dropout: identity (eval mode)
            if return_attn:
                attn_ref[h] = p.astype(attn_ref.dtype)

            head_out = jnp.einsum('bqk,bkv->bqv', p.astype(jnp.bfloat16), vh,
                                  preferred_element_type=jnp.float32)

            # concat(head_outs) @ Wfc == sum_h head_out_h @ Wfc[h*d_v:(h+1)*d_v]
            # (sublane-aligned row slice of W_fc — no lane repack).
            o = o + jnp.dot(head_out.reshape(M_q, d_v).astype(jnp.bfloat16),
                            W_fc[h * d_v:(h + 1) * d_v, :],
                            preferred_element_type=jnp.float32)

        o = o + bfc_ref[...]
        # output dropout: identity (eval mode)
        y = o + xq_flat                                    # residual (f32)

        # LayerNorm over d_model (f32)
        mu = jnp.mean(y, axis=-1, keepdims=True)
        var = jnp.mean((y - mu) ** 2, axis=-1, keepdims=True)
        norm = (y - mu) * jax.lax.rsqrt(var + eps)
        out_ref[...] = (norm * gamma_ref[...] + beta_ref[...]).reshape(Bt, len_q, d_model)

    return kernel


def _largest_divisor_leq(n, cap):
    for c in range(min(n, cap), 0, -1):
        if n % c == 0:
            return c
    return 1


def multi_head_attention(q, k, v, mask, params, *, n_head, d_k, d_v,
                         return_attn=True, block_b=None):
    sz_b, len_q, d_model = q.shape
    _, len_k, _ = k.shape

    # Batch tile: fold several batches into one grid step (amortizes per-step
    # overhead, raises MXU row utilization at small len_q). The cap keeps the
    # VMEM footprint bounded at realistic (len, d_model); tune per generation.
    if block_b is None:
        block_b = _largest_divisor_leq(sz_b, 4)
    assert sz_b % block_b == 0, "block_b must divide sz_b"
    Bt = block_b
    grid = (sz_b // Bt,)

    (wq, bq, wk, bk, wv, bv, wfc, bfc, gamma, beta) = params

    # Fold the softmax temperature into the Q projection HOST-SIDE (free), and
    # cast MXU operands to bf16 (accumulation stays f32 inside the kernel).
    inv_temperature = 1.0 / math.sqrt(d_k)
    wq_b = (wq * inv_temperature).astype(jnp.bfloat16)
    bq_s = bq * inv_temperature
    wk_b = wk.astype(jnp.bfloat16)
    wv_b = wv.astype(jnp.bfloat16)
    wfc_b = wfc.astype(jnp.bfloat16)

    # Mask as int8: 4x less HBM read traffic than a dense f32 mask.
    mask_i8 = (mask > 0).astype(jnp.int8)

    kernel = make_mha_kernel(n_head, d_k, d_v, d_model, len_q, len_k, Bt,
                             return_attn=return_attn)

    full2d = lambda shape: pl.BlockSpec(shape, lambda i: (0, 0))

    out_shape = [jax.ShapeDtypeStruct((sz_b, len_q, d_model), jnp.float32)]
    out_specs = [pl.BlockSpec((Bt, len_q, d_model), lambda i: (i, 0, 0))]
    if return_attn:
        out_shape.append(
            jax.ShapeDtypeStruct((n_head, sz_b, len_q, len_k), jnp.float32))
        out_specs.append(
            pl.BlockSpec((n_head, Bt, len_q, len_k), lambda i: (0, i, 0, 0)))
        out_shape_arg, out_specs_arg = tuple(out_shape), tuple(out_specs)
    else:
        out_shape_arg, out_specs_arg = out_shape[0], out_specs[0]

    results = pl.pallas_call(
        kernel,
        out_shape=out_shape_arg,
        grid=grid,
        in_specs=[
            pl.BlockSpec((Bt, len_q, d_model), lambda i: (i, 0, 0)),   # q
            pl.BlockSpec((Bt, len_k, d_model), lambda i: (i, 0, 0)),   # k
            pl.BlockSpec((Bt, len_k, d_model), lambda i: (i, 0, 0)),   # v
            pl.BlockSpec((Bt, len_q, len_k), lambda i: (i, 0, 0)),     # mask (int8)
            full2d((d_model, n_head * d_k)),                           # wq (bf16, pre-scaled)
            full2d((1, n_head * d_k)),                                 # bq (pre-scaled)
            full2d((d_model, n_head * d_k)),                           # wk (bf16)
            full2d((1, n_head * d_k)),                                 # bk
            full2d((d_model, n_head * d_v)),                           # wv (bf16)
            full2d((1, n_head * d_v)),                                 # bv
            full2d((n_head * d_v, d_model)),                           # wfc (bf16)
            full2d((1, d_model)),                                      # bfc
            full2d((1, d_model)),                                      # ln gamma
            full2d((1, d_model)),                                      # ln beta
        ],
        out_specs=out_specs_arg,
        compiler_params=pltpu.CompilerParams(
            dimension_semantics=("parallel",),
            vmem_limit_bytes=32 * 1024 * 1024),
    )(q, k, v, mask_i8, wq_b, bq_s, wk_b, bk, wv_b, bv, wfc_b, bfc, gamma, beta)

    if return_attn:
        out, attn4 = results
        # (n_head, sz_b, len_q, len_k) -> (n_head*sz_b, len_q, len_k), index h*sz_b+b
        attn = attn4.reshape(n_head * sz_b, len_q, len_k)
        return out, attn
    return results, None


def init_params(key, n_head, d_model, d_k, d_v):
    ks = jax.random.split(key, 8)
    std_qk = math.sqrt(2.0 / (d_model + d_k))
    std_v = math.sqrt(2.0 / (d_model + d_v))
    std_fc = math.sqrt(2.0 / (n_head * d_v + d_model))  # xavier normal

    wq = std_qk * jax.random.normal(ks[0], (d_model, n_head * d_k), jnp.float32)
    wk = std_qk * jax.random.normal(ks[1], (d_model, n_head * d_k), jnp.float32)
    wv = std_v * jax.random.normal(ks[2], (d_model, n_head * d_v), jnp.float32)
    wfc = std_fc * jax.random.normal(ks[3], (n_head * d_v, d_model), jnp.float32)

    bound = 1.0 / math.sqrt(d_model)
    bq = jax.random.uniform(ks[4], (1, n_head * d_k), jnp.float32, -bound, bound)
    bk = jax.random.uniform(ks[5], (1, n_head * d_k), jnp.float32, -bound, bound)
    bv = jax.random.uniform(ks[6], (1, n_head * d_v), jnp.float32, -bound, bound)
    bfc = jax.random.uniform(ks[7], (1, d_model), jnp.float32,
                             -1.0 / math.sqrt(n_head * d_v), 1.0 / math.sqrt(n_head * d_v))

    gamma = jnp.ones((1, d_model), jnp.float32)
    beta = jnp.zeros((1, d_model), jnp.float32)
    return (wq, bq, wk, bk, wv, bv, wfc, bfc, gamma, beta)


def mha_reference(q, k, v, mask, params, *, n_head, d_k, d_v, eps=1e-5):
    """Pure-JAX f32 reference (mirrors the PyTorch module, eval mode)."""
    wq, bq, wk, bk, wv, bv, wfc, bfc, gamma, beta = params
    sz_b, len_q, d_model = q.shape
    _, len_k, _ = k.shape
    Q = (q.reshape(-1, d_model) @ wq + bq).reshape(sz_b, len_q, n_head, d_k)
    K = (k.reshape(-1, d_model) @ wk + bk).reshape(sz_b, len_k, n_head, d_k)
    V = (v.reshape(-1, d_model) @ wv + bv).reshape(sz_b, len_k, n_head, d_v)
    Qh = jnp.transpose(Q, (2, 0, 1, 3)).reshape(n_head * sz_b, len_q, d_k)
    Kh = jnp.transpose(K, (2, 0, 1, 3)).reshape(n_head * sz_b, len_k, d_k)
    Vh = jnp.transpose(V, (2, 0, 1, 3)).reshape(n_head * sz_b, len_k, d_v)
    s = jnp.einsum('bqd,bkd->bqk', Qh, Kh) / math.sqrt(d_k)
    m = jnp.tile(mask > 0, (n_head, 1, 1))
    s = jnp.where(m, -1e30, s)
    attn = jax.nn.softmax(s, axis=-1)
    oh = jnp.einsum('bqk,bkv->bqv', attn, Vh)
    oh = oh.reshape(n_head, sz_b, len_q, d_v)
    oh = jnp.transpose(oh, (1, 2, 0, 3)).reshape(sz_b, len_q, n_head * d_v)
    y = (oh @ wfc + bfc) + q
    mu = y.mean(-1, keepdims=True)
    var = ((y - mu) ** 2).mean(-1, keepdims=True)
    out = (y - mu) * jax.lax.rsqrt(var + eps) * gamma + beta
    return out, attn


if __name__ == "__main__":
    n_head, d_model, d_k, d_v = 2, 32, 8, 8
    sz_b, seq = 2, 8

    key = jax.random.PRNGKey(0)
    kq, kk, kv, kp = jax.random.split(key, 4)
    q = jax.random.normal(kq, (sz_b, seq, d_model), jnp.float32)
    k = jax.random.normal(kk, (sz_b, seq, d_model), jnp.float32)
    v = jax.random.normal(kv, (sz_b, seq, d_model), jnp.float32)

    # causal-style mask: mask[b, i, j] = 1.0 (masked) where j > i
    row = jnp.arange(seq)[:, None]
    col = jnp.arange(seq)[None, :]
    mask = jnp.broadcast_to((col > row).astype(jnp.float32), (sz_b, seq, seq))

    params = init_params(kp, n_head, d_model, d_k, d_v)

    out, attn = multi_head_attention(q, k, v, mask, params,
                                     n_head=n_head, d_k=d_k, d_v=d_v)
    out = jax.block_until_ready(out)
    attn = jax.block_until_ready(attn)

    assert out.shape == (sz_b, seq, d_model)
    assert attn.shape == (n_head * sz_b, seq, seq)
    assert bool(jnp.all(jnp.isfinite(out)))
    assert bool(jnp.all(jnp.isfinite(attn)))

    # Loose tolerances: kernel uses bf16 MXU operands + approx EUP reciprocal.
    out_ref, attn_ref = mha_reference(q, k, v, mask, params,
                                      n_head=n_head, d_k=d_k, d_v=d_v)
    np.testing.assert_allclose(np.asarray(out), np.asarray(out_ref), atol=8e-2)
    np.testing.assert_allclose(np.asarray(attn), np.asarray(attn_ref), atol=4e-2)

    print("KERNEL_OK")
</pallas_src>

<mosaic_0001>
module attributes {stable_mosaic.version = 11 : i64} {
  func.func @kernel(%arg0: i32, %arg1: memref<2x8x32xf32, #tpu.memory_space<vmem>>, %arg2: memref<2x8x32xf32, #tpu.memory_space<vmem>>, %arg3: memref<2x8x32xf32, #tpu.memory_space<vmem>>, %arg4: memref<2x8x8xi8, #tpu.memory_space<vmem>>, %arg5: memref<32x16xbf16, #tpu.memory_space<vmem>>, %arg6: memref<1x16xf32, #tpu.memory_space<vmem>>, %arg7: memref<32x16xbf16, #tpu.memory_space<vmem>>, %arg8: memref<1x16xf32, #tpu.memory_space<vmem>>, %arg9: memref<32x16xbf16, #tpu.memory_space<vmem>>, %arg10: memref<1x16xf32, #tpu.memory_space<vmem>>, %arg11: memref<16x32xbf16, #tpu.memory_space<vmem>>, %arg12: memref<1x32xf32, #tpu.memory_space<vmem>>, %arg13: memref<1x32xf32, #tpu.memory_space<vmem>>, %arg14: memref<1x32xf32, #tpu.memory_space<vmem>>, %arg15: memref<2x8x32xf32, #tpu.memory_space<vmem>>, %arg16: memref<2x2x8x8xf32, #tpu.memory_space<vmem>>) attributes {dimension_semantics = [#tpu.dimension_semantics<parallel>], iteration_bounds = array<i64: 1>, scalar_prefetch = 0 : i64, scratch_operands = 0 : i64, tpu.core_type = #tpu.core_type<tc>, window_params = [{transform_indices = @transform_0, window_bounds = array<i64: 2, 8, 32>}, {transform_indices = @transform_1, window_bounds = array<i64: 2, 8, 32>}, {transform_indices = @transform_2, window_bounds = array<i64: 2, 8, 32>}, {transform_indices = @transform_3, window_bounds = array<i64: 2, 8, 8>}, {pipeline_mode = #tpu.pipeline_mode<synchronous>, transform_indices = @transform_4, window_bounds = array<i64: 32, 16>}, {pipeline_mode = #tpu.pipeline_mode<synchronous>, transform_indices = @transform_5, window_bounds = array<i64: 1, 16>}, {pipeline_mode = #tpu.pipeline_mode<synchronous>, transform_indices = @transform_6, window_bounds = array<i64: 32, 16>}, {pipeline_mode = #tpu.pipeline_mode<synchronous>, transform_indices = @transform_7, window_bounds = array<i64: 1, 16>}, {pipeline_mode = #tpu.pipeline_mode<synchronous>, transform_indices = @transform_8, window_bounds = array<i64: 32, 16>}, {pipeline_mode = #tpu.pipeline_mode<synchronous>, transform_indices = @transform_9, window_bounds = array<i64: 1, 16>}, {pipeline_mode = #tpu.pipeline_mode<synchronous>, transform_indices = @transform_10, window_bounds = array<i64: 16, 32>}, {pipeline_mode = #tpu.pipeline_mode<synchronous>, transform_indices = @transform_11, window_bounds = array<i64: 1, 32>}, {pipeline_mode = #tpu.pipeline_mode<synchronous>, transform_indices = @transform_12, window_bounds = array<i64: 1, 32>}, {pipeline_mode = #tpu.pipeline_mode<synchronous>, transform_indices = @transform_13, window_bounds = array<i64: 1, 32>}, {transform_indices = @transform_14, window_bounds = array<i64: 2, 8, 32>}, {transform_indices = @transform_15, window_bounds = array<i64: 2, 2, 8, 8>}]} {
    %c0 = arith.constant 0 : index
    %c0_0 = arith.constant 0 : index
    %c0_1 = arith.constant 0 : index
    %0 = vector.load %arg1[%c0, %c0_0, %c0_1] : memref<2x8x32xf32, #tpu.memory_space<vmem>>, vector<2x8x32xf32>
    %1 = vector.shape_cast %0 : vector<2x8x32xf32> to vector<16x32xf32>
    %2 = arith.truncf %1 : vector<16x32xf32> to vector<16x32xbf16>
    %c0_2 = arith.constant 0 : index
    %c0_3 = arith.constant 0 : index
    %c0_4 = arith.constant 0 : index
    %3 = vector.load %arg2[%c0_2, %c0_3, %c0_4] : memref<2x8x32xf32, #tpu.memory_space<vmem>>, vector<2x8x32xf32>
    %4 = vector.shape_cast %3 : vector<2x8x32xf32> to vector<16x32xf32>
    %5 = arith.truncf %4 : vector<16x32xf32> to vector<16x32xbf16>
    %c0_5 = arith.constant 0 : index
    %c0_6 = arith.constant 0 : index
    %c0_7 = arith.constant 0 : index
    %6 = vector.load %arg3[%c0_5, %c0_6, %c0_7] : memref<2x8x32xf32, #tpu.memory_space<vmem>>, vector<2x8x32xf32>
    %7 = vector.shape_cast %6 : vector<2x8x32xf32> to vector<16x32xf32>
    %8 = arith.truncf %7 : vector<16x32xf32> to vector<16x32xbf16>
    %c0_8 = arith.constant 0 : index
    %c0_9 = arith.constant 0 : index
    %9 = vector.load %arg5[%c0_8, %c0_9] : memref<32x16xbf16, #tpu.memory_space<vmem>>, vector<32x16xbf16>
    %cst = arith.constant dense<0.000000e+00> : vector<16x16xf32>
    %10 = tpu.matmul %2, %9, %cst {dimension_numbers = #tpu.dot_dimension_numbers<[1], [0], [0], [1], [0, 0, 1, 1], [], []>} : vector<16x32xbf16>, vector<32x16xbf16>, vector<16x16xf32> -> vector<16x16xf32>
    %c0_10 = arith.constant 0 : index
    %c0_11 = arith.constant 0 : index
    %11 = vector.load %arg6[%c0_10, %c0_11] : memref<1x16xf32, #tpu.memory_space<vmem>>, vector<1x16xf32>
    %12 = vector.broadcast %11 : vector<1x16xf32> to vector<16x16xf32>
    %13 = arith.addf %10, %12 : vector<16x16xf32>
    %c0_12 = arith.constant 0 : index
    %c0_13 = arith.constant 0 : index
    %14 = vector.load %arg7[%c0_12, %c0_13] : memref<32x16xbf16, #tpu.memory_space<vmem>>, vector<32x16xbf16>
    %cst_14 = arith.constant dense<0.000000e+00> : vector<16x16xf32>
    %15 = tpu.matmul %5, %14, %cst_14 {dimension_numbers = #tpu.dot_dimension_numbers<[1], [0], [0], [1], [0, 0, 1, 1], [], []>} : vector<16x32xbf16>, vector<32x16xbf16>, vector<16x16xf32> -> vector<16x16xf32>
    %c0_15 = arith.constant 0 : index
    %c0_16 = arith.constant 0 : index
    %16 = vector.load %arg8[%c0_15, %c0_16] : memref<1x16xf32, #tpu.memory_space<vmem>>, vector<1x16xf32>
    %17 = vector.broadcast %16 : vector<1x16xf32> to vector<16x16xf32>
    %18 = arith.addf %15, %17 : vector<16x16xf32>
    %c0_17 = arith.constant 0 : index
    %c0_18 = arith.constant 0 : index
    %19 = vector.load %arg9[%c0_17, %c0_18] : memref<32x16xbf16, #tpu.memory_space<vmem>>, vector<32x16xbf16>
    %cst_19 = arith.constant dense<0.000000e+00> : vector<16x16xf32>
    %20 = tpu.matmul %8, %19, %cst_19 {dimension_numbers = #tpu.dot_dimension_numbers<[1], [0], [0], [1], [0, 0, 1, 1], [], []>} : vector<16x32xbf16>, vector<32x16xbf16>, vector<16x16xf32> -> vector<16x16xf32>
    %c0_20 = arith.constant 0 : index
    %c0_21 = arith.constant 0 : index
    %21 = vector.load %arg10[%c0_20, %c0_21] : memref<1x16xf32, #tpu.memory_space<vmem>>, vector<1x16xf32>
    %22 = vector.broadcast %21 : vector<1x16xf32> to vector<16x16xf32>
    %23 = arith.addf %20, %22 : vector<16x16xf32>
    %24 = arith.truncf %13 : vector<16x16xf32> to vector<16x16xbf16>
    %25 = vector.shape_cast %24 : vector<16x16xbf16> to vector<2x8x16xbf16>
    %26 = arith.truncf %18 : vector<16x16xf32> to vector<16x16xbf16>
    %27 = vector.shape_cast %26 : vector<16x16xbf16> to vector<2x8x16xbf16>
    %28 = arith.truncf %23 : vector<16x16xf32> to vector<16x16xbf16>
    %29 = vector.shape_cast %28 : vector<16x16xbf16> to vector<2x8x16xbf16>
    %c0_22 = arith.constant 0 : index
    %c0_23 = arith.constant 0 : index
    %c0_24 = arith.constant 0 : index
    %30 = vector.load %arg4[%c0_22, %c0_23, %c0_24] : memref<2x8x8xi8, #tpu.memory_space<vmem>>, vector<2x8x8xi8>
    %31 = arith.extsi %30 : vector<2x8x8xi8> to vector<2x8x8xi32>
    %c0_i32 = arith.constant 0 : i32
    %32 = vector.broadcast %c0_i32 : i32 to vector<2x8x8xi32>
    %33 = arith.cmpi sgt, %31, %32 : vector<2x8x8xi32>
    %cst_25 = arith.constant -1.000000e+30 : f32
    %cst_26 = arith.constant 0.000000e+00 : f32
    %34 = vector.broadcast %cst_25 : f32 to vector<2x8x8xf32>
    %35 = vector.broadcast %cst_26 : f32 to vector<2x8x8xf32>
    %36 = arith.select %33, %34, %35 : vector<2x8x8xi1>, vector<2x8x8xf32>
    %c0_27 = arith.constant 0 : index
    %c0_28 = arith.constant 0 : index
    %37 = vector.load %arg11[%c0_27, %c0_28] : memref<16x32xbf16, #tpu.memory_space<vmem>>, vector<16x32xbf16>
    %cst_29 = arith.constant 0.000000e+00 : f32
    %38 = vector.broadcast %cst_29 : f32 to vector<16x32xf32>
    %39 = vector.extract_strided_slice %25 {offsets = [0, 0, 0], sizes = [2, 8, 8], strides = [1, 1, 1]} : vector<2x8x16xbf16> to vector<2x8x8xbf16>
    %40 = vector.extract_strided_slice %27 {offsets = [0, 0, 0], sizes = [2, 8, 8], strides = [1, 1, 1]} : vector<2x8x16xbf16> to vector<2x8x8xbf16>
    %41 = vector.extract_strided_slice %29 {offsets = [0, 0, 0], sizes = [2, 8, 8], strides = [1, 1, 1]} : vector<2x8x16xbf16> to vector<2x8x8xbf16>
    "tpu.trace_start"() <{level = 10 : i32, message = "bqd,bkd->bqk"}> : () -> ()
    %cst_30 = arith.constant dense<0.000000e+00> : vector<2x8x8xf32>
    %42 = tpu.matmul %39, %40, %cst_30 {dimension_numbers = #tpu.dot_dimension_numbers<[2], [2], [1], [1], [0, 0, 0, 1, 1, 1], [0], [0]>} : vector<2x8x8xbf16>, vector<2x8x8xbf16>, vector<2x8x8xf32> -> vector<2x8x8xf32>
    "tpu.trace_stop"() : () -> ()
    %43 = arith.addf %42, %36 : vector<2x8x8xf32>
    %cst_31 = arith.constant dense<0xFF800000> : vector<2x8xf32>
    %44 = vector.multi_reduction <maximumf>, %43, %cst_31 [2] : vector<2x8x8xf32> to vector<2x8xf32>
    %45 = vector.shape_cast %44 : vector<2x8xf32> to vector<2x8x1xf32>
    %46 = vector.broadcast %45 : vector<2x8x1xf32> to vector<2x8x8xf32>
    %47 = arith.subf %43, %46 : vector<2x8x8xf32>
    %48 = math.exp %47 : vector<2x8x8xf32>
    %cst_32 = arith.constant dense<0.000000e+00> : vector<2x8xf32>
    %49 = vector.multi_reduction <add>, %48, %cst_32 [2] : vector<2x8x8xf32> to vector<2x8xf32>
    %50 = vector.shape_cast %49 : vector<2x8xf32> to vector<2x8x1xf32>
    %51 = tpu.reciprocal %50 {approx = true} : vector<2x8x1xf32> -> vector<2x8x1xf32>
    %52 = vector.broadcast %51 : vector<2x8x1xf32> to vector<2x8x8xf32>
    %53 = arith.mulf %48, %52 : vector<2x8x8xf32>
    %c0_33 = arith.constant 0 : index
    %c0_34 = arith.constant 0 : index
    %c0_35 = arith.constant 0 : index
    %c0_36 = arith.constant 0 : index
    %54 = vector.load %arg16[%c0_33, %c0_34, %c0_35, %c0_36] : memref<2x2x8x8xf32, #tpu.memory_space<vmem>>, vector<1x2x8x8xf32>
    %55 = vector.shape_cast %54 : vector<1x2x8x8xf32> to vector<2x8x8xf32>
    %56 = vector.shape_cast %53 : vector<2x8x8xf32> to vector<1x2x8x8xf32>
    tpu.vector_store %arg16[%c0_33, %c0_34, %c0_35, %c0_36], %56 {strides = array<i32>} : memref<2x2x8x8xf32, #tpu.memory_space<vmem>>, vector<1x2x8x8xf32>,
    %57 = arith.truncf %53 : vector<2x8x8xf32> to vector<2x8x8xbf16>
    "tpu.trace_start"() <{level = 10 : i32, message = "bqk,bkv->bqv"}> : () -> ()
    %cst_37 = arith.constant dense<0.000000e+00> : vector<2x8x8xf32>
    %58 = tpu.matmul %57, %41, %cst_37 {dimension_numbers = #tpu.dot_dimension_numbers<[2], [1], [1], [2], [0, 0, 0, 1, 1, 2], [0], [0]>} : vector<2x8x8xbf16>, vector<2x8x8xbf16>, vector<2x8x8xf32> -> vector<2x8x8xf32>
    "tpu.trace_stop"() : () -> ()
    %59 = vector.shape_cast %58 : vector<2x8x8xf32> to vector<16x8xf32>
    %60 = arith.truncf %59 : vector<16x8xf32> to vector<16x8xbf16>
    %61 = vector.extract_strided_slice %37 {offsets = [0, 0], sizes = [8, 32], strides = [1, 1]} : vector<16x32xbf16> to vector<8x32xbf16>
    %cst_38 = arith.constant dense<0.000000e+00> : vector<16x32xf32>
    %62 = tpu.matmul %60, %61, %cst_38 {dimension_numbers = #tpu.dot_dimension_numbers<[1], [0], [0], [1], [0, 0, 1, 1], [], []>} : vector<16x8xbf16>, vector<8x32xbf16>, vector<16x32xf32> -> vector<16x32xf32>
    %63 = arith.addf %38, %62 : vector<16x32xf32>
    %64 = vector.extract_strided_slice %25 {offsets = [0, 0, 8], sizes = [2, 8, 8], strides = [1, 1, 1]} : vector<2x8x16xbf16> to vector<2x8x8xbf16>
    %65 = vector.extract_strided_slice %27 {offsets = [0, 0, 8], sizes = [2, 8, 8], strides = [1, 1, 1]} : vector<2x8x16xbf16> to vector<2x8x8xbf16>
    %66 = vector.extract_strided_slice %29 {offsets = [0, 0, 8], sizes = [2, 8, 8], strides = [1, 1, 1]} : vector<2x8x16xbf16> to vector<2x8x8xbf16>
    "tpu.trace_start"() <{level = 10 : i32, message = "bqd,bkd->bqk"}> : () -> ()
    %cst_39 = arith.constant dense<0.000000e+00> : vector<2x8x8xf32>
    %67 = tpu.matmul %64, %65, %cst_39 {dimension_numbers = #tpu.dot_dimension_numbers<[2], [2], [1], [1], [0, 0, 0, 1, 1, 1], [0], [0]>} : vector<2x8x8xbf16>, vector<2x8x8xbf16>, vector<2x8x8xf32> -> vector<2x8x8xf32>
    "tpu.trace_stop"() : () -> ()
    %68 = arith.addf %67, %36 : vector<2x8x8xf32>
    %cst_40 = arith.constant dense<0xFF800000> : vector<2x8xf32>
    %69 = vector.multi_reduction <maximumf>, %68, %cst_40 [2] : vector<2x8x8xf32> to vector<2x8xf32>
    %70 = vector.shape_cast %69 : vector<2x8xf32> to vector<2x8x1xf32>
    %71 = vector.broadcast %70 : vector<2x8x1xf32> to vector<2x8x8xf32>
    %72 = arith.subf %68, %71 : vector<2x8x8xf32>
    %73 = math.exp %72 : vector<2x8x8xf32>
    %cst_41 = arith.constant dense<0.000000e+00> : vector<2x8xf32>
    %74 = vector.multi_reduction <add>, %73, %cst_41 [2] : vector<2x8x8xf32> to vector<2x8xf32>
    %75 = vector.shape_cast %74 : vector<2x8xf32> to vector<2x8x1xf32>
    %76 = tpu.reciprocal %75 {approx = true} : vector<2x8x1xf32> -> vector<2x8x1xf32>
    %77 = vector.broadcast %76 : vector<2x8x1xf32> to vector<2x8x8xf32>
    %78 = arith.mulf %73, %77 : vector<2x8x8xf32>
    %c1 = arith.constant 1 : index
    %c0_42 = arith.constant 0 : index
    %c0_43 = arith.constant 0 : index
    %c0_44 = arith.constant 0 : index
    %79 = vector.load %arg16[%c1, %c0_42, %c0_43, %c0_44] : memref<2x2x8x8xf32, #tpu.memory_space<vmem>>, vector<1x2x8x8xf32>
    %80 = vector.shape_cast %79 : vector<1x2x8x8xf32> to vector<2x8x8xf32>
    %81 = vector.shape_cast %78 : vector<2x8x8xf32> to vector<1x2x8x8xf32>
    tpu.vector_store %arg16[%c1, %c0_42, %c0_43, %c0_44], %81 {strides = array<i32>} : memref<2x2x8x8xf32, #tpu.memory_space<vmem>>, vector<1x2x8x8xf32>,
    %82 = arith.truncf %78 : vector<2x8x8xf32> to vector<2x8x8xbf16>
    "tpu.trace_start"() <{level = 10 : i32, message = "bqk,bkv->bqv"}> : () -> ()
    %cst_45 = arith.constant dense<0.000000e+00> : vector<2x8x8xf32>
    %83 = tpu.matmul %82, %66, %cst_45 {dimension_numbers = #tpu.dot_dimension_numbers<[2], [1], [1], [2], [0, 0, 0, 1, 1, 2], [0], [0]>} : vector<2x8x8xbf16>, vector<2x8x8xbf16>, vector<2x8x8xf32> -> vector<2x8x8xf32>
    "tpu.trace_stop"() : () -> ()
    %84 = vector.shape_cast %83 : vector<2x8x8xf32> to vector<16x8xf32>
    %85 = arith.truncf %84 : vector<16x8xf32> to vector<16x8xbf16>
    %86 = vector.extract_strided_slice %37 {offsets = [8, 0], sizes = [8, 32], strides = [1, 1]} : vector<16x32xbf16> to vector<8x32xbf16>
    %cst_46 = arith.constant dense<0.000000e+00> : vector<16x32xf32>
    %87 = tpu.matmul %85, %86, %cst_46 {dimension_numbers = #tpu.dot_dimension_numbers<[1], [0], [0], [1], [0, 0, 1, 1], [], []>} : vector<16x8xbf16>, vector<8x32xbf16>, vector<16x32xf32> -> vector<16x32xf32>
    %88 = arith.addf %63, %87 : vector<16x32xf32>
    %c0_47 = arith.constant 0 : index
    %c0_48 = arith.constant 0 : index
    %89 = vector.load %arg12[%c0_47, %c0_48] : memref<1x32xf32, #tpu.memory_space<vmem>>, vector<1x32xf32>
    %90 = vector.broadcast %89 : vector<1x32xf32> to vector<16x32xf32>
    %91 = arith.addf %88, %90 : vector<16x32xf32>
    %92 = arith.addf %91, %1 : vector<16x32xf32>
    %cst_49 = arith.constant dense<0.000000e+00> : vector<16xf32>
    %93 = vector.multi_reduction <add>, %92, %cst_49 [1] : vector<16x32xf32> to vector<16xf32>
    %94 = vector.shape_cast %93 : vector<16xf32> to vector<16x1xf32>
    %cst_50 = arith.constant 3.200000e+01 : f32
    %95 = vector.broadcast %cst_50 : f32 to vector<16x1xf32>
    %96 = arith.divf %94, %95 : vector<16x1xf32>
    %97 = vector.broadcast %96 : vector<16x1xf32> to vector<16x32xf32>
    %98 = arith.subf %92, %97 : vector<16x32xf32>
    %99 = arith.mulf %98, %98 : vector<16x32xf32>
    %cst_51 = arith.constant dense<0.000000e+00> : vector<16xf32>
    %100 = vector.multi_reduction <add>, %99, %cst_51 [1] : vector<16x32xf32> to vector<16xf32>
    %101 = vector.shape_cast %100 : vector<16xf32> to vector<16x1xf32>
    %cst_52 = arith.constant 3.200000e+01 : f32
    %102 = vector.broadcast %cst_52 : f32 to vector<16x1xf32>
    %103 = arith.divf %101, %102 : vector<16x1xf32>
    %104 = vector.broadcast %96 : vector<16x1xf32> to vector<16x32xf32>
    %105 = arith.subf %92, %104 : vector<16x32xf32>
    %cst_53 = arith.constant 9.99999974E-6 : f32
    %106 = vector.broadcast %cst_53 : f32 to vector<16x1xf32>
    %107 = arith.addf %103, %106 : vector<16x1xf32>
    %108 = math.rsqrt %107 : vector<16x1xf32>
    %109 = vector.broadcast %108 : vector<16x1xf32> to vector<16x32xf32>
    %110 = arith.mulf %105, %109 : vector<16x32xf32>
    %c0_54 = arith.constant 0 : index
    %c0_55 = arith.constant 0 : index
    %111 = vector.load %arg13[%c0_54, %c0_55] : memref<1x32xf32, #tpu.memory_space<vmem>>, vector<1x32xf32>
    %112 = vector.broadcast %111 : vector<1x32xf32> to vector<16x32xf32>
    %113 = arith.mulf %110, %112 : vector<16x32xf32>
    %c0_56 = arith.constant 0 : index
    %c0_57 = arith.constant 0 : index
    %114 = vector.load %arg14[%c0_56, %c0_57] : memref<1x32xf32, #tpu.memory_space<vmem>>, vector<1x32xf32>
    %115 = vector.broadcast %114 : vector<1x32xf32> to vector<16x32xf32>
    %116 = arith.addf %113, %115 : vector<16x32xf32>
    %117 = vector.shape_cast %116 : vector<16x32xf32> to vector<2x8x32xf32>
    %c0_58 = arith.constant 0 : index
    %c0_59 = arith.constant 0 : index
    %c0_60 = arith.constant 0 : index
    %118 = vector.load %arg15[%c0_58, %c0_59, %c0_60] : memref<2x8x32xf32, #tpu.memory_space<vmem>>, vector<2x8x32xf32>
    tpu.vector_store %arg15[%c0_58, %c0_59, %c0_60], %117 {strides = array<i32>} : memref<2x8x32xf32, #tpu.memory_space<vmem>>, vector<2x8x32xf32>,
    return
  }
  func.func @transform_0(%arg0: i32) -> (i32, i32, i32) {
    %c0_i32 = arith.constant 0 : i32
    %c0_i32_0 = arith.constant 0 : i32
    %c0_i32_1 = arith.constant 0 : i32
    return %arg0, %c0_i32, %c0_i32_0 : i32, i32, i32
  }
  func.func @transform_1(%arg0: i32) -> (i32, i32, i32) {
    %c0_i32 = arith.constant 0 : i32
    %c0_i32_0 = arith.constant 0 : i32
    %c0_i32_1 = arith.constant 0 : i32
    return %arg0, %c0_i32, %c0_i32_0 : i32, i32, i32
  }
  func.func @transform_2(%arg0: i32) -> (i32, i32, i32) {
    %c0_i32 = arith.constant 0 : i32
    %c0_i32_0 = arith.constant 0 : i32
    %c0_i32_1 = arith.constant 0 : i32
    return %arg0, %c0_i32, %c0_i32_0 : i32, i32, i32
  }
  func.func @transform_3(%arg0: i32) -> (i32, i32, i32) {
    %c0_i32 = arith.constant 0 : i32
    %c0_i32_0 = arith.constant 0 : i32
    %c0_i32_1 = arith.constant 0 : i32
    return %arg0, %c0_i32, %c0_i32_0 : i32, i32, i32
  }
  func.func @transform_4(%arg0: i32) -> (i32, i32) {
    %c0_i32 = arith.constant 0 : i32
    %c0_i32_0 = arith.constant 0 : i32
    %c0_i32_1 = arith.constant 0 : i32
    return %c0_i32, %c0_i32_0 : i32, i32
  }
  func.func @transform_5(%arg0: i32) -> (i32, i32) {
    %c0_i32 = arith.constant 0 : i32
    %c0_i32_0 = arith.constant 0 : i32
    %c0_i32_1 = arith.constant 0 : i32
    return %c0_i32, %c0_i32_0 : i32, i32
  }
  func.func @transform_6(%arg0: i32) -> (i32, i32) {
    %c0_i32 = arith.constant 0 : i32
    %c0_i32_0 = arith.constant 0 : i32
    %c0_i32_1 = arith.constant 0 : i32
    return %c0_i32, %c0_i32_0 : i32, i32
  }
  func.func @transform_7(%arg0: i32) -> (i32, i32) {
    %c0_i32 = arith.constant 0 : i32
    %c0_i32_0 = arith.constant 0 : i32
    %c0_i32_1 = arith.constant 0 : i32
    return %c0_i32, %c0_i32_0 : i32, i32
  }
  func.func @transform_8(%arg0: i32) -> (i32, i32) {
    %c0_i32 = arith.constant 0 : i32
    %c0_i32_0 = arith.constant 0 : i32
    %c0_i32_1 = arith.constant 0 : i32
    return %c0_i32, %c0_i32_0 : i32, i32
  }
  func.func @transform_9(%arg0: i32) -> (i32, i32) {
    %c0_i32 = arith.constant 0 : i32
    %c0_i32_0 = arith.constant 0 : i32
    %c0_i32_1 = arith.constant 0 : i32
    return %c0_i32, %c0_i32_0 : i32, i32
  }
  func.func @transform_10(%arg0: i32) -> (i32, i32) {
    %c0_i32 = arith.constant 0 : i32
    %c0_i32_0 = arith.constant 0 : i32
    %c0_i32_1 = arith.constant 0 : i32
    return %c0_i32, %c0_i32_0 : i32, i32
  }
  func.func @transform_11(%arg0: i32) -> (i32, i32) {
    %c0_i32 = arith.constant 0 : i32
    %c0_i32_0 = arith.constant 0 : i32
    %c0_i32_1 = arith.constant 0 : i32
    return %c0_i32, %c0_i32_0 : i32, i32
  }
  func.func @transform_12(%arg0: i32) -> (i32, i32) {
    %c0_i32 = arith.constant 0 : i32
    %c0_i32_0 = arith.constant 0 : i32
    %c0_i32_1 = arith.constant 0 : i32
    return %c0_i32, %c0_i32_0 : i32, i32
  }
  func.func @transform_13(%arg0: i32) -> (i32, i32) {
    %c0_i32 = arith.constant 0 : i32
    %c0_i32_0 = arith.constant 0 : i32
    %c0_i32_1 = arith.constant 0 : i32
    return %c0_i32, %c0_i32_0 : i32, i32
  }
  func.func @transform_14(%arg0: i32) -> (i32, i32, i32) {
    %c0_i32 = arith.constant 0 : i32
    %c0_i32_0 = arith.constant 0 : i32
    %c0_i32_1 = arith.constant 0 : i32
    return %arg0, %c0_i32, %c0_i32_0 : i32, i32, i32
  }
  func.func @transform_15(%arg0: i32) -> (i32, i32, i32, i32) {
    %c0_i32 = arith.constant 0 : i32
    %c0_i32_0 = arith.constant 0 : i32
    %c0_i32_1 = arith.constant 0 : i32
    %c0_i32_2 = arith.constant 0 : i32
    return %c0_i32, %arg0, %c0_i32_0, %c0_i32_1 : i32, i32, i32, i32
  }
}

</mosaic_0001>

<llo_original>
// kernel: tpu_custom_call.1
$region0: #{tpu_custom_call.1}
  #allocation0 [shape = 'u32[]', space=smem, size = 0x4, offset = 0x4, fixed_abs, tag = 'smem constant byte address 0x4 - core index']
  #allocation1 [shape = 'u32[144,128]{1,0:T(1,128)}', space=vmem, size = 0x12000, scoped, tag = 'internal scratch']
  %s0 = inlined_call_operand.vmem [shape: f32[2,8,32], index: 0, kind: input, shape index: {}]
  %s1 = inlined_call_operand.vmem [shape: f32[2,8,32], index: 1, kind: input, shape index: {}]
  %s2 = inlined_call_operand.vmem [shape: f32[2,8,32], index: 2, kind: input, shape index: {}]
  %s3 = inlined_call_operand.vmem [shape: s8[2,8,8], index: 3, kind: input, shape index: {}]
  %s4 = inlined_call_operand.vmem [shape: bf16[32,16], index: 4, kind: input, shape index: {}]
  %s5 = inlined_call_operand.vmem [shape: f32[1,16], index: 5, kind: input, shape index: {}]
  %s6 = inlined_call_operand.vmem [shape: bf16[32,16], index: 6, kind: input, shape index: {}]
  %s7 = inlined_call_operand.vmem [shape: f32[1,16], index: 7, kind: input, shape index: {}]
  %s8 = inlined_call_operand.vmem [shape: bf16[32,16], index: 8, kind: input, shape index: {}]
  %s9 = inlined_call_operand.vmem [shape: f32[1,16], index: 9, kind: input, shape index: {}]
  %s10 = inlined_call_operand.vmem [shape: bf16[16,32], index: 10, kind: input, shape index: {}]
  %s11 = inlined_call_operand.vmem [shape: f32[1,32], index: 11, kind: input, shape index: {}]
  %s12 = inlined_call_operand.vmem [shape: f32[1,32], index: 12, kind: input, shape index: {}]
  %s13 = inlined_call_operand.vmem [shape: f32[1,32], index: 13, kind: input, shape index: {}]
  %s14 = inlined_call_operand.hbm [shape: f32[2,8,32], index: 14, kind: output, shape index: {0}]
  %s15 = inlined_call_operand.hbm [shape: f32[2,2,8,8], index: 15, kind: output, shape index: {1}]
  %16 = xla_tuple %s14, %s15
  %s17 = sld [smem:[#allocation0]]
  $region74: #{tpu_custom_call.1} parent=0
    _
  %s19 = ssub.s32 1, %s17
  %s20 = scalar_select 0, %s19, %s17
  $region1: #{tpu_custom_call.1} parent=0
    #allocation2 [shape = 'u8[8192]{0}', space=vmem, size = 0x2000, scoped, tag = 'output window, operand 0, single buffered']
    #allocation3 [shape = 's32[1]{0}', space=sflag, size = 0x4, scoped, tag = 'scoped memory for tpu_custom_call.1']
    #allocation4 [shape = 'u8[16384]{0}', space=vmem, size = 0x4000, scoped, tag = 'output window, operand 1, single buffered']
    #allocation5 [shape = 's32[1]{0}', space=sflag, size = 0x4, scoped, tag = 'scoped memory for tpu_custom_call.1']
    %21 = vsyncpa [#allocation3], 0
    %22 = vsyncpa [#allocation5], 0
    // Predicated region
    $region2: #{tpu_custom_call.1} parent=1 // pred_check
      _
    $region3: #{tpu_custom_call.1} parent=1 // pred_check_branch
      %24 = sbr.rel (0) target = $region5
    $region4: #{tpu_custom_call.1} parent=1 // pred_region
      _
    $region5: #{tpu_custom_call.1} parent=1 // pred_fallthru
      _
    // Predicated region
    $region6: #{tpu_custom_call.1} parent=1 // pred_check
      _
    $region7: #{tpu_custom_call.1} parent=1 // pred_check_branch
      %26 = sbr.rel (0) target = $region9
    $region8: #{tpu_custom_call.1} parent=1 // pred_region
      _
    $region9: #{tpu_custom_call.1} parent=1 // pred_fallthru
      _
    // Predicated region
    $region10: #{tpu_custom_call.1} parent=1 // pred_check
      _
    $region11: #{tpu_custom_call.1} parent=1 // pred_check_branch
      %28 = sbr.rel (0) target = $region13
    $region12: #{tpu_custom_call.1} parent=1 // pred_region
      _
    $region13: #{tpu_custom_call.1} parent=1 // pred_fallthru
      _
    // Predicated region
    $region14: #{tpu_custom_call.1} parent=1 // pred_check
      _
    $region15: #{tpu_custom_call.1} parent=1 // pred_check_branch
      %30 = sbr.rel (0) target = $region17
    $region16: #{tpu_custom_call.1} parent=1 // pred_region
      _
    $region17: #{tpu_custom_call.1} parent=1 // pred_fallthru
      _
    // Predicated region
    $region18: #{tpu_custom_call.1} parent=1 // pred_check
      _
    $region19: #{tpu_custom_call.1} parent=1 // pred_check_branch
      %32 = sbr.rel (0) target = $region21
    $region20: #{tpu_custom_call.1} parent=1 // pred_region
      _
    $region21: #{tpu_custom_call.1} parent=1 // pred_fallthru
      _
    // Predicated region
    $region22: #{tpu_custom_call.1} parent=1 // pred_check
      _
    $region23: #{tpu_custom_call.1} parent=1 // pred_check_branch
      %34 = sbr.rel (0) target = $region25
    $region24: #{tpu_custom_call.1} parent=1 // pred_region
      _
    $region25: #{tpu_custom_call.1} parent=1 // pred_fallthru
      _
    // Predicated region
    $region26: #{tpu_custom_call.1} parent=1 // pred_check
      _
    $region27: #{tpu_custom_call.1} parent=1 // pred_check_branch
      %36 = sbr.rel (0) target = $region29
    $region28: #{tpu_custom_call.1} parent=1 // pred_region
      _
    $region29: #{tpu_custom_call.1} parent=1 // pred_fallthru
      _
    // Predicated region
    $region30: #{tpu_custom_call.1} parent=1 // pred_check
      _
    $region31: #{tpu_custom_call.1} parent=1 // pred_check_branch
      %38 = sbr.rel (0) target = $region33
    $region32: #{tpu_custom_call.1} parent=1 // pred_region
      _
    $region33: #{tpu_custom_call.1} parent=1 // pred_fallthru
      _
    // Predicated region
    $region34: #{tpu_custom_call.1} parent=1 // pred_check
      _
    $region35: #{tpu_custom_call.1} parent=1 // pred_check_branch
      %40 = sbr.rel (0) target = $region37
    $region36: #{tpu_custom_call.1} parent=1 // pred_region
      _
    $region37: #{tpu_custom_call.1} parent=1 // pred_fallthru
      _
    // Predicated region
    $region38: #{tpu_custom_call.1} parent=1 // pred_check
      _
    $region39: #{tpu_custom_call.1} parent=1 // pred_check_branch
      %42 = sbr.rel (0) target = $region41
    $region40: #{tpu_custom_call.1} parent=1 // pred_region
      _
    $region41: #{tpu_custom_call.1} parent=1 // pred_fallthru
      _
    // Predicated region
    $region42: #{tpu_custom_call.1} parent=1 // pred_check
      _
    $region43: #{tpu_custom_call.1} parent=1 // pred_check_branch
      %44 = sbr.rel (0) target = $region45
    $region44: #{tpu_custom_call.1} parent=1 // pred_region
      _
    $region45: #{tpu_custom_call.1} parent=1 // pred_fallthru
      _
    // Predicated region
    $region46: #{tpu_custom_call.1} parent=1 // pred_check
      _
    $region47: #{tpu_custom_call.1} parent=1 // pred_check_branch
      %46 = sbr.rel (0) target = $region49
    $region48: #{tpu_custom_call.1} parent=1 // pred_region
      _
    $region49: #{tpu_custom_call.1} parent=1 // pred_fallthru
      _
    // Predicated region
    $region50: #{tpu_custom_call.1} parent=1 // pred_check
      _
    $region51: #{tpu_custom_call.1} parent=1 // pred_check_branch
      %48 = sbr.rel (0) target = $region53
    $region52: #{tpu_custom_call.1} parent=1 // pred_region
      _
    $region53: #{tpu_custom_call.1} parent=1 // pred_fallthru
      _
    // Predicated region
    $region54: #{tpu_custom_call.1} parent=1 // pred_check
      _
    $region55: #{tpu_custom_call.1} parent=1 // pred_check_branch
      %50 = sbr.rel (0) target = $region57
    $region56: #{tpu_custom_call.1} parent=1 // pred_region
      _
    $region57: #{tpu_custom_call.1} parent=1 // pred_fallthru
      _
    %v52 = vld [vmem:[%s0] sm:$0xff]
    %v53 = vld [vmem:[%s0 + $0x8] sm:$0xff]
    %v54 = vpack.c.bf16 %v53, %v52
    %v55 = vld [vmem:[%s1] sm:$0xff]
    %v56 = vld [vmem:[%s1 + $0x8] sm:$0xff]
    %v57 = vpack.c.bf16 %v56, %v55
    %v58 = vld [vmem:[%s2] sm:$0xff]
    %v59 = vld [vmem:[%s2 + $0x8] sm:$0xff]
    %v60 = vpack.c.bf16 %v59, %v58
    %v61 = vld [vmem:[%s4] sm:$0xf]
    %v62 = vld [vmem:[%s4 + $0x4] sm:$0xf]
    %v63 = vld [vmem:[%s4 + $0x8] sm:$0xf]
    %v64 = vld [vmem:[%s4 + $0xc] sm:$0xf]
    %v65 = vld [vmem:[%s5] sm:$0x1]
    %v67 = vlaneseq
    %v68 = vshrl.u32 %v67, 7
    %v69 = vsub.s32 0, %v68
    %v70 = vrot.slane %v65, %v69
    %v76 = vunpack.c.l.b16 %v61
    %v77 = vunpack.c.l.b16 %v62
    %v78 = vunpack.c.l.b16 %v63
    %v79 = vunpack.c.l.b16 %v64
    %v80 = vpack.c.b16 %v77, %v76
    %v81 = vpack.c.b16 %v79, %v78
    %vm84 = vcmask 261120
    %v86 = vsel %vm84, %v54, 0
    %88 = vmatprep.subr.bf16.mxu0 0
    %89 = vmatpush1.bf16.msra.mxu0 0
    %90 = vmatprep.subr.bf16.mxu0 0
    %91 = vmatpush1.bf16.msra.mxu0 0
    %92 = vmatprep.subr.bf16.mxu0 0
    %93 = vmatpush1.bf16.msra.mxu0 0
    %94 = vmatprep.subr.bf16.mxu0 0
    %95 = vmatpush1.bf16.msra.mxu0 0
    %96 = vmatprep.subr.bf16.mxu0 0
    %97 = vmatpush1.bf16.msra.mxu0 0
    %98 = vmatprep.subr.bf16.mxu0 0
    %99 = vmatpush1.bf16.msra.mxu0 0
    %100 = vmatprep.subr.bf16.mxu0 0
    %101 = vmatpush1.bf16.msra.mxu0 %v81
    %102 = vmatprep.subr.bf16.mxu0 0
    %103 = vmatpush1.bf16.msra.mxu0 %v80
    %104 = vmatprep.subr.bf16.mxu0 0
    %105 = vmatpush2.bf16.msra.mxu0 0
    %106 = vmatprep.subr.bf16.mxu0 0
    %107 = vmatpush2.bf16.msra.mxu0 0
    %108 = vmatprep.subr.bf16.mxu0 0
    %109 = vmatpush2.bf16.msra.mxu0 0
    %110 = vmatprep.subr.bf16.mxu0 0
    %111 = vmatpush2.bf16.msra.mxu0 0
    %112 = vmatprep.subr.bf16.mxu0 0
    %113 = vmatpush2.bf16.msra.mxu0 0
    %114 = vmatprep.subr.bf16.mxu0 0
    %115 = vmatpush2.bf16.msra.mxu0 0
    %116 = vmatprep.subr.bf16.mxu0 0
    %117 = vmatpush2.bf16.msra.mxu0 0
    %118 = vmatprep.subr.bf16.mxu0 0
    %119 = vmatpush2.bf16.msra.mxu0 0
    %120 = vmatprep.mubr.bf16.mxu0 0
    %121 = vmatmul.mubr.bf16.gmra.mxu0 %v86
    %v122 = vpop.f32.mrf.mxu0
    %v123 = vadd.f32 %v70, %v122
    %v124 = vpop.f32.mrf.mxu0
    %v125 = vpop.f32.mrf.mxu0
    %v126 = vadd.f32 %v70, %v125
    %v127 = vpop.f32.mrf.mxu0
    %128 = vdwg.mxu0
    %v129 = vld [vmem:[%s6] sm:$0xf]
    %v130 = vld [vmem:[%s6 + $0x4] sm:$0xf]
    %v131 = vld [vmem:[%s6 + $0x8] sm:$0xf]
    %v132 = vld [vmem:[%s6 + $0xc] sm:$0xf]
    %v133 = vld [vmem:[%s7] sm:$0x1]
    %v135 = vlaneseq
    %v136 = vshrl.u32 %v135, 7
    %v137 = vsub.s32 0, %v136
    %v138 = vrot.slane %v133, %v137
    %v144 = vunpack.c.l.b16 %v129
    %v145 = vunpack.c.l.b16 %v130
    %v146 = vunpack.c.l.b16 %v131
    %v147 = vunpack.c.l.b16 %v132
    %v148 = vpack.c.b16 %v145, %v144
    %v149 = vpack.c.b16 %v147, %v146
    %v153 = vsel %vm84, %v57, 0
    %155 = vmatprep.subr.bf16.mxu0 0
    %156 = vmatpush1.bf16.msra.mxu0 0
    %157 = vmatprep.subr.bf16.mxu0 0
    %158 = vmatpush1.bf16.msra.mxu0 0
    %159 = vmatprep.subr.bf16.mxu0 0
    %160 = vmatpush1.bf16.msra.mxu0 0
    %161 = vmatprep.subr.bf16.mxu0 0
    %162 = vmatpush1.bf16.msra.mxu0 0
    %163 = vmatprep.subr.bf16.mxu0 0
    %164 = vmatpush1.bf16.msra.mxu0 0
    %165 = vmatprep.subr.bf16.mxu0 0
    %166 = vmatpush1.bf16.msra.mxu0 0
    %167 = vmatprep.subr.bf16.mxu0 0
    %168 = vmatpush1.bf16.msra.mxu0 %v149
    %169 = vmatprep.subr.bf16.mxu0 0
    %170 = vmatpush1.bf16.msra.mxu0 %v148
    %171 = vmatprep.subr.bf16.mxu0 0
    %172 = vmatpush2.bf16.msra.mxu0 0
    %173 = vmatprep.subr.bf16.mxu0 0
    %174 = vmatpush2.bf16.msra.mxu0 0
    %175 = vmatprep.subr.bf16.mxu0 0
    %176 = vmatpush2.bf16.msra.mxu0 0
    %177 = vmatprep.subr.bf16.mxu0 0
    %178 = vmatpush2.bf16.msra.mxu0 0
    %179 = vmatprep.subr.bf16.mxu0 0
    %180 = vmatpush2.bf16.msra.mxu0 0
    %181 = vmatprep.subr.bf16.mxu0 0
    %182 = vmatpush2.bf16.msra.mxu0 0
    %183 = vmatprep.subr.bf16.mxu0 0
    %184 = vmatpush2.bf16.msra.mxu0 0
    %185 = vmatprep.subr.bf16.mxu0 0
    %186 = vmatpush2.bf16.msra.mxu0 0
    %187 = vmatprep.mubr.bf16.mxu0 0
    %188 = vmatmul.mubr.bf16.gmra.mxu0 %v153
    %v189 = vpop.f32.mrf.mxu0
    %v190 = vadd.f32 %v138, %v189
    %v191 = vpop.f32.mrf.mxu0
    %v192 = vpop.f32.mrf.mxu0
    %v193 = vadd.f32 %v138, %v192
    %v194 = vpop.f32.mrf.mxu0
    %195 = vdwg.mxu0
    %v196 = vld [vmem:[%s8] sm:$0xf]
    %v197 = vld [vmem:[%s8 + $0x4] sm:$0xf]
    %v198 = vld [vmem:[%s8 + $0x8] sm:$0xf]
    %v199 = vld [vmem:[%s8 + $0xc] sm:$0xf]
    %v200 = vld [vmem:[%s9] sm:$0x1]
    %v202 = vlaneseq
    %v203 = vshrl.u32 %v202, 7
    %v204 = vsub.s32 0, %v203
    %v205 = vrot.slane %v200, %v204
    %v211 = vunpack.c.l.b16 %v196
    %v212 = vunpack.c.l.b16 %v197
    %v213 = vunpack.c.l.b16 %v198
    %v214 = vunpack.c.l.b16 %v199
    %v215 = vpack.c.b16 %v212, %v211
    %v216 = vpack.c.b16 %v214, %v213
    %v220 = vsel %vm84, %v60, 0
    %222 = vmatprep.subr.bf16.mxu0 0
    %223 = vmatpush1.bf16.msra.mxu0 0
    %224 = vmatprep.subr.bf16.mxu0 0
    %225 = vmatpush1.bf16.msra.mxu0 0
    %226 = vmatprep.subr.bf16.mxu0 0
    %227 = vmatpush1.bf16.msra.mxu0 0
    %228 = vmatprep.subr.bf16.mxu0 0
    %229 = vmatpush1.bf16.msra.mxu0 0
    %230 = vmatprep.subr.bf16.mxu0 0
    %231 = vmatpush1.bf16.msra.mxu0 0
    %232 = vmatprep.subr.bf16.mxu0 0
    %233 = vmatpush1.bf16.msra.mxu0 0
    %234 = vmatprep.subr.bf16.mxu0 0
    %235 = vmatpush1.bf16.msra.mxu0 %v216
    %236 = vmatprep.subr.bf16.mxu0 0
    %237 = vmatpush1.bf16.msra.mxu0 %v215
    %238 = vmatprep.subr.bf16.mxu0 0
    %239 = vmatpush2.bf16.msra.mxu0 0
    %240 = vmatprep.subr.bf16.mxu0 0
    %241 = vmatpush2.bf16.msra.mxu0 0
    %242 = vmatprep.subr.bf16.mxu0 0
    %243 = vmatpush2.bf16.msra.mxu0 0
    %244 = vmatprep.subr.bf16.mxu0 0
    %245 = vmatpush2.bf16.msra.mxu0 0
    %246 = vmatprep.subr.bf16.mxu0 0
    %247 = vmatpush2.bf16.msra.mxu0 0
    %248 = vmatprep.subr.bf16.mxu0 0
    %249 = vmatpush2.bf16.msra.mxu0 0
    %250 = vmatprep.subr.bf16.mxu0 0
    %251 = vmatpush2.bf16.msra.mxu0 0
    %252 = vmatprep.subr.bf16.mxu0 0
    %253 = vmatpush2.bf16.msra.mxu0 0
    %254 = vmatprep.mubr.bf16.mxu0 0
    %255 = vmatmul.mubr.bf16.gmra.mxu0 %v220
    %v256 = vpop.f32.mrf.mxu0
    %v257 = vadd.f32 %v205, %v256
    %v258 = vpop.f32.mrf.mxu0
    %v259 = vpop.f32.mrf.mxu0
    %v260 = vadd.f32 %v205, %v259
    %v261 = vpop.f32.mrf.mxu0
    %262 = vdwg.mxu0
    %v263 = vpack.c.bf16 %v126, %v123
    %v265 = vunpack.c.l.b16 %v263
    %v266 = vunpack.c.h.b16 %v263
    %v267 = vpack.c.b16 %v265, %v265
    %v268 = vpack.c.b16 %v266, %v266
    %v269 = vpack.c.bf16 %v193, %v190
    %v271 = vunpack.c.l.b16 %v269
    %v272 = vunpack.c.h.b16 %v269
    %v273 = vpack.c.b16 %v271, %v271
    %v274 = vpack.c.b16 %v272, %v272
    %v275 = vpack.c.bf16 %v260, %v257
    %v277 = vunpack.c.l.b16 %v275
    %v278 = vunpack.c.h.b16 %v275
    %v279 = vpack.c.b16 %v277, %v277
    %v280 = vpack.c.b16 %v278, %v278
    %v281 = vld [vmem:[%s3] sm:$0x3]
    %v282 = vld [vmem:[%s3 + $0x2] sm:$0x3]
    %v283 = vunpack.c.0.s8 %v281
    %v284 = vunpack.c.0.s8 %v282
    %vm285 = vcmp.gt.s32.totalorder %v283, 0
    %vm286 = vcmp.gt.s32.totalorder %v284, 0
    %v287 = vsel %vm285, -1e+30, 0.0
    %v288 = vsel %vm286, -1e+30, 0.0
    %v289 = vld [vmem:[%s10] sm:$0xf]
    %v290 = vld [vmem:[%s10 + $0x4] sm:$0xf]
    %vm291 = vcmask 64512
    %v293 = vsel %vm291, %v267, 0
    %v296 = vsel %vm291, %v273, 0
    %298 = vmatprep.subr.bf16.mxu0 0
    %299 = vmatpush1.bf16.xpose.msra.mxu0 0
    %300 = vmatprep.subr.bf16.mxu0 0
    %301 = vmatpush1.bf16.xpose.msra.mxu0 0
    %302 = vmatprep.subr.bf16.mxu0 0
    %303 = vmatpush1.bf16.xpose.msra.mxu0 0
    %304 = vmatprep.subr.bf16.mxu0 0
    %305 = vmatpush1.bf16.xpose.msra.mxu0 0
    %306 = vmatprep.subr.bf16.mxu0 0
    %307 = vmatpush1.bf16.xpose.msra.mxu0 0
    %308 = vmatprep.subr.bf16.mxu0 0
    %309 = vmatpush1.bf16.xpose.msra.mxu0 0
    %310 = vmatprep.subr.bf16.mxu0 0
    %311 = vmatpush1.bf16.xpose.msra.mxu0 0
    %312 = vmatprep.subr.bf16.mxu0 0
    %313 = vmatpush1.bf16.xpose.msra.mxu0 %v296
    %314 = vmatprep.subr.bf16.mxu0 0
    %315 = vmatpush2.bf16.xpose.msra.mxu0 0
    %316 = vmatprep.subr.bf16.mxu0 0
    %317 = vmatpush2.bf16.xpose.msra.mxu0 0
    %318 = vmatprep.subr.bf16.mxu0 0
    %319 = vmatpush2.bf16.xpose.msra.mxu0 0
    %320 = vmatprep.subr.bf16.mxu0 0
    %321 = vmatpush2.bf16.xpose.msra.mxu0 0
    %322 = vmatprep.subr.bf16.mxu0 0
    %323 = vmatpush2.bf16.xpose.msra.mxu0 0
    %324 = vmatprep.subr.bf16.mxu0 0
    %325 = vmatpush2.bf16.xpose.msra.mxu0 0
    %326 = vmatprep.subr.bf16.mxu0 0
    %327 = vmatpush2.bf16.xpose.msra.mxu0 0
    %328 = vmatprep.subr.bf16.mxu0 0
    %329 = vmatpush2.bf16.xpose.msra.mxu0 0
    %330 = vmatprep.mubr.bf16.mxu0 0
    %331 = vmatmul.mubr.bf16.gmra.mxu0 %v293
    %v332 = vpop.f32.mrf.mxu0
    %v333 = vadd.f32 %v287, %v332
    %v334 = vpop.f32.mrf.mxu0
    %v335 = vpop.f32.mrf.mxu0
    %v336 = vpop.f32.mrf.mxu0
    %337 = vdwg.mxu0
    %v339 = vsel %vm291, %v268, 0
    %v342 = vsel %vm291, %v274, 0
    %344 = vmatprep.subr.bf16.mxu0 0
    %345 = vmatpush1.bf16.xpose.msra.mxu0 0
    %346 = vmatprep.subr.bf16.mxu0 0
    %347 = vmatpush1.bf16.xpose.msra.mxu0 0
    %348 = vmatprep.subr.bf16.mxu0 0
    %349 = vmatpush1.bf16.xpose.msra.mxu0 0
    %350 = vmatprep.subr.bf16.mxu0 0
    %351 = vmatpush1.bf16.xpose.msra.mxu0 0
    %352 = vmatprep.subr.bf16.mxu0 0
    %353 = vmatpush1.bf16.xpose.msra.mxu0 0
    %354 = vmatprep.subr.bf16.mxu0 0
    %355 = vmatpush1.bf16.xpose.msra.mxu0 0
    %356 = vmatprep.subr.bf16.mxu0 0
    %357 = vmatpush1.bf16.xpose.msra.mxu0 0
    %358 = vmatprep.subr.bf16.mxu0 0
    %359 = vmatpush1.bf16.xpose.msra.mxu0 %v342
    %360 = vmatprep.subr.bf16.mxu0 0
    %361 = vmatpush2.bf16.xpose.msra.mxu0 0
    %362 = vmatprep.subr.bf16.mxu0 0
    %363 = vmatpush2.bf16.xpose.msra.mxu0 0
    %364 = vmatprep.subr.bf16.mxu0 0
    %365 = vmatpush2.bf16.xpose.msra.mxu0 0
    %366 = vmatprep.subr.bf16.mxu0 0
    %367 = vmatpush2.bf16.xpose.msra.mxu0 0
    %368 = vmatprep.subr.bf16.mxu0 0
    %369 = vmatpush2.bf16.xpose.msra.mxu0 0
    %370 = vmatprep.subr.bf16.mxu0 0
    %371 = vmatpush2.bf16.xpose.msra.mxu0 0
    %372 = vmatprep.subr.bf16.mxu0 0
    %373 = vmatpush2.bf16.xpose.msra.mxu0 0
    %374 = vmatprep.subr.bf16.mxu0 0
    %375 = vmatpush2.bf16.xpose.msra.mxu0 0
    %376 = vmatprep.mubr.bf16.mxu0 0
    %377 = vmatmul.mubr.bf16.gmra.mxu0 %v339
    %v378 = vpop.f32.mrf.mxu0
    %v379 = vadd.f32 %v288, %v378
    %v380 = vpop.f32.mrf.mxu0
    %v381 = vpop.f32.mrf.mxu0
    %v382 = vpop.f32.mrf.mxu0
    %383 = vdwg.mxu0
    %v384 = vsel %vm291, %v333, -inf
    %385 = vmax.xlane.f32.xlu0 %v384
    %v386 = vpop.xlane.xlu0 %385
    %v387 = vsel %vm291, %v379, -inf
    %388 = vmax.xlane.f32.xlu0 %v387
    %v389 = vpop.xlane.xlu0 %388
    %v390 = vsub.f32 %v333, %v386
    %v391 = vsub.f32 %v379, %v389
    %v392 = vmul.f32 %v390, 1.442695
    %v393 = vpow.pop %v392
    %v394 = vmul.f32 %v391, 1.442695
    %v395 = vpow.pop %v394
    %v396 = vsel %vm291, %v393, 0.0
    %397 = vadd.xlane.f32.xlu0 %v396
    %v398 = vpop.xlane.xlu0 %397
    %v399 = vsel %vm291, %v395, 0.0
    %400 = vadd.xlane.f32.xlu0 %v399
    %v401 = vpop.xlane.xlu0 %400
    %v402 = vrcp.pop %v398
    %v403 = vrcp.pop %v401
    %v404 = vmul.f32 %v393, %v402
    %v405 = vmul.f32 %v395, %v403
    %406 = vst.msk [vmem:[#allocation4] sm:$0xff] %vm291, %v404
    %407 = vst.msk [vmem:[#allocation4 + $0x8] sm:$0xff] %vm291, %v405
    %v408 = vpack.c.bf16 %v404, %v404
    %v409 = vpack.c.bf16 %v405, %v405
    %v411 = vsel %vm291, %v408, 0
    %vm413 = vcmask 1043456
    %v415 = vsel %vm413, %v279, 0
    %417 = vmatprep.subr.bf16.mxu0 0
    %418 = vmatpush1.bf16.msra.mxu0 0
    %419 = vmatprep.subr.bf16.mxu0 0
    %420 = vmatpush1.bf16.msra.mxu0 0
    %421 = vmatprep.subr.bf16.mxu0 0
    %422 = vmatpush1.bf16.msra.mxu0 0
    %423 = vmatprep.subr.bf16.mxu0 0
    %424 = vmatpush1.bf16.msra.mxu0 0
    %425 = vmatprep.subr.bf16.mxu0 0
    %426 = vmatpush1.bf16.msra.mxu0 0
    %427 = vmatprep.subr.bf16.mxu0 0
    %428 = vmatpush1.bf16.msra.mxu0 0
    %429 = vmatprep.subr.bf16.mxu0 0
    %430 = vmatpush1.bf16.msra.mxu0 0
    %431 = vmatprep.subr.bf16.mxu0 0
    %432 = vmatpush1.bf16.msra.mxu0 %v415
    %433 = vmatprep.subr.bf16.mxu0 0
    %434 = vmatpush2.bf16.msra.mxu0 0
    %435 = vmatprep.subr.bf16.mxu0 0
    %436 = vmatpush2.bf16.msra.mxu0 0
    %437 = vmatprep.subr.bf16.mxu0 0
    %438 = vmatpush2.bf16.msra.mxu0 0
    %439 = vmatprep.subr.bf16.mxu0 0
    %440 = vmatpush2.bf16.msra.mxu0 0
    %441 = vmatprep.subr.bf16.mxu0 0
    %442 = vmatpush2.bf16.msra.mxu0 0
    %443 = vmatprep.subr.bf16.mxu0 0
    %444 = vmatpush2.bf16.msra.mxu0 0
    %445 = vmatprep.subr.bf16.mxu0 0
    %446 = vmatpush2.bf16.msra.mxu0 0
    %447 = vmatprep.subr.bf16.mxu0 0
    %448 = vmatpush2.bf16.msra.mxu0 0
    %449 = vmatprep.mubr.bf16.mxu0 0
    %450 = vmatmul.mubr.bf16.gmra.mxu0 %v411
    %v451 = vpop.f32.mrf.mxu0
    %v452 = vadd.f32 0.0, %v451
    %v453 = vpop.f32.mrf.mxu0
    %v454 = vpop.f32.mrf.mxu0
    %v455 = vpop.f32.mrf.mxu0
    %456 = vdwg.mxu0
    %v458 = vsel %vm291, %v409, 0
    %v461 = vsel %vm413, %v280, 0
    %463 = vmatprep.subr.bf16.mxu0 0
    %464 = vmatpush1.bf16.msra.mxu0 0
    %465 = vmatprep.subr.bf16.mxu0 0
    %466 = vmatpush1.bf16.msra.mxu0 0
    %467 = vmatprep.subr.bf16.mxu0 0
    %468 = vmatpush1.bf16.msra.mxu0 0
    %469 = vmatprep.subr.bf16.mxu0 0
    %470 = vmatpush1.bf16.msra.mxu0 0
    %471 = vmatprep.subr.bf16.mxu0 0
    %472 = vmatpush1.bf16.msra.mxu0 0
    %473 = vmatprep.subr.bf16.mxu0 0
    %474 = vmatpush1.bf16.msra.mxu0 0
    %475 = vmatprep.subr.bf16.mxu0 0
    %476 = vmatpush1.bf16.msra.mxu0 0
    %477 = vmatprep.subr.bf16.mxu0 0
    %478 = vmatpush1.bf16.msra.mxu0 %v461
    %479 = vmatprep.subr.bf16.mxu0 0
    %480 = vmatpush2.bf16.msra.mxu0 0
    %481 = vmatprep.subr.bf16.mxu0 0
    %482 = vmatpush2.bf16.msra.mxu0 0
    %483 = vmatprep.subr.bf16.mxu0 0
    %484 = vmatpush2.bf16.msra.mxu0 0
    %485 = vmatprep.subr.bf16.mxu0 0
    %486 = vmatpush2.bf16.msra.mxu0 0
    %487 = vmatprep.subr.bf16.mxu0 0
    %488 = vmatpush2.bf16.msra.mxu0 0
    %489 = vmatprep.subr.bf16.mxu0 0
    %490 = vmatpush2.bf16.msra.mxu0 0
    %491 = vmatprep.subr.bf16.mxu0 0
    %492 = vmatpush2.bf16.msra.mxu0 0
    %493 = vmatprep.subr.bf16.mxu0 0
    %494 = vmatpush2.bf16.msra.mxu0 0
    %495 = vmatprep.mubr.bf16.mxu0 0
    %496 = vmatmul.mubr.bf16.gmra.mxu0 %v458
    %v497 = vpop.f32.mrf.mxu0
    %v498 = vadd.f32 0.0, %v497
    %v499 = vpop.f32.mrf.mxu0
    %v500 = vpop.f32.mrf.mxu0
    %v501 = vpop.f32.mrf.mxu0
    %502 = vdwg.mxu0
    %v503 = vpack.c.bf16 %v498, %v452
    %504 = vrot.lane.b32.xlu0 %v267, 120
    %v505 = vpop.permute.xlu0 %504
    %506 = vrot.lane.b32.xlu0 %v273, 120
    %v507 = vpop.permute.xlu0 %506
    %v509 = vsel %vm291, %v505, 0
    %v512 = vsel %vm291, %v507, 0
    %514 = vmatprep.subr.bf16.mxu0 0
    %515 = vmatpush1.bf16.xpose.msra.mxu0 0
    %516 = vmatprep.subr.bf16.mxu0 0
    %517 = vmatpush1.bf16.xpose.msra.mxu0 0
    %518 = vmatprep.subr.bf16.mxu0 0
    %519 = vmatpush1.bf16.xpose.msra.mxu0 0
    %520 = vmatprep.subr.bf16.mxu0 0
    %521 = vmatpush1.bf16.xpose.msra.mxu0 0
    %522 = vmatprep.subr.bf16.mxu0 0
    %523 = vmatpush1.bf16.xpose.msra.mxu0 0
    %524 = vmatprep.subr.bf16.mxu0 0
    %525 = vmatpush1.bf16.xpose.msra.mxu0 0
    %526 = vmatprep.subr.bf16.mxu0 0
    %527 = vmatpush1.bf16.xpose.msra.mxu0 0
    %528 = vmatprep.subr.bf16.mxu0 0
    %529 = vmatpush1.bf16.xpose.msra.mxu0 %v512
    %530 = vmatprep.subr.bf16.mxu0 0
    %531 = vmatpush2.bf16.xpose.msra.mxu0 0
    %532 = vmatprep.subr.bf16.mxu0 0
    %533 = vmatpush2.bf16.xpose.msra.mxu0 0
    %534 = vmatprep.subr.bf16.mxu0 0
    %535 = vmatpush2.bf16.xpose.msra.mxu0 0
    %536 = vmatprep.subr.bf16.mxu0 0
    %537 = vmatpush2.bf16.xpose.msra.mxu0 0
    %538 = vmatprep.subr.bf16.mxu0 0
    %539 = vmatpush2.bf16.xpose.msra.mxu0 0
    %540 = vmatprep.subr.bf16.mxu0 0
    %541 = vmatpush2.bf16.xpose.msra.mxu0 0
    %542 = vmatprep.subr.bf16.mxu0 0
    %543 = vmatpush2.bf16.xpose.msra.mxu0 0
    %544 = vmatprep.subr.bf16.mxu0 0
    %545 = vmatpush2.bf16.xpose.msra.mxu0 0
    %546 = vmatprep.mubr.bf16.mxu0 0
    %547 = vmatmul.mubr.bf16.gmra.mxu0 %v509
    %v548 = vpop.f32.mrf.mxu0
    %v549 = vadd.f32 %v287, %v548
    %v550 = vpop.f32.mrf.mxu0
    %v551 = vpop.f32.mrf.mxu0
    %v552 = vpop.f32.mrf.mxu0
    %553 = vdwg.mxu0
    %554 = vrot.lane.b32.xlu0 %v268, 120
    %v555 = vpop.permute.xlu0 %554
    %556 = vrot.lane.b32.xlu0 %v274, 120
    %v557 = vpop.permute.xlu0 %556
    %v559 = vsel %vm291, %v555, 0
    %v562 = vsel %vm291, %v557, 0
    %564 = vmatprep.subr.bf16.mxu0 0
    %565 = vmatpush1.bf16.xpose.msra.mxu0 0
    %566 = vmatprep.subr.bf16.mxu0 0
    %567 = vmatpush1.bf16.xpose.msra.mxu0 0
    %568 = vmatprep.subr.bf16.mxu0 0
    %569 = vmatpush1.bf16.xpose.msra.mxu0 0
    %570 = vmatprep.subr.bf16.mxu0 0
    %571 = vmatpush1.bf16.xpose.msra.mxu0 0
    %572 = vmatprep.subr.bf16.mxu0 0
    %573 = vmatpush1.bf16.xpose.msra.mxu0 0
    %574 = vmatprep.subr.bf16.mxu0 0
    %575 = vmatpush1.bf16.xpose.msra.mxu0 0
    %576 = vmatprep.subr.bf16.mxu0 0
    %577 = vmatpush1.bf16.xpose.msra.mxu0 0
    %578 = vmatprep.subr.bf16.mxu0 0
    %579 = vmatpush1.bf16.xpose.msra.mxu0 %v562
    %580 = vmatprep.subr.bf16.mxu0 0
    %581 = vmatpush2.bf16.xpose.msra.mxu0 0
    %582 = vmatprep.subr.bf16.mxu0 0
    %583 = vmatpush2.bf16.xpose.msra.mxu0 0
    %584 = vmatprep.subr.bf16.mxu0 0
    %585 = vmatpush2.bf16.xpose.msra.mxu0 0
    %586 = vmatprep.subr.bf16.mxu0 0
    %587 = vmatpush2.bf16.xpose.msra.mxu0 0
    %588 = vmatprep.subr.bf16.mxu0 0
    %589 = vmatpush2.bf16.xpose.msra.mxu0 0
    %590 = vmatprep.subr.bf16.mxu0 0
    %591 = vmatpush2.bf16.xpose.msra.mxu0 0
    %592 = vmatprep.subr.bf16.mxu0 0
    %593 = vmatpush2.bf16.xpose.msra.mxu0 0
    %594 = vmatprep.subr.bf16.mxu0 0
    %595 = vmatpush2.bf16.xpose.msra.mxu0 0
    %596 = vmatprep.mubr.bf16.mxu0 0
    %597 = vmatmul.mubr.bf16.gmra.mxu0 %v559
    %v598 = vpop.f32.mrf.mxu0
    %v599 = vadd.f32 %v288, %v598
    %v600 = vpop.f32.mrf.mxu0
    %v601 = vpop.f32.mrf.mxu0
    %v602 = vpop.f32.mrf.mxu0
    %603 = vdwg.mxu0
    %v604 = vsel %vm291, %v549, -inf
    %605 = vmax.xlane.f32.xlu0 %v604
    %v606 = vpop.xlane.xlu0 %605
    %v607 = vsel %vm291, %v599, -inf
    %608 = vmax.xlane.f32.xlu0 %v607
    %v609 = vpop.xlane.xlu0 %608
    %v610 = vsub.f32 %v549, %v606
    %v611 = vsub.f32 %v599, %v609
    %v612 = vmul.f32 %v610, 1.442695
    %v613 = vpow.pop %v612
    %v614 = vmul.f32 %v611, 1.442695
    %v615 = vpow.pop %v614
    %v616 = vsel %vm291, %v613, 0.0
    %617 = vadd.xlane.f32.xlu0 %v616
    %v618 = vpop.xlane.xlu0 %617
    %v619 = vsel %vm291, %v615, 0.0
    %620 = vadd.xlane.f32.xlu0 %v619
    %v621 = vpop.xlane.xlu0 %620
    %v622 = vrcp.pop %v618
    %v623 = vrcp.pop %v621
    %v624 = vmul.f32 %v613, %v622
    %v625 = vmul.f32 %v615, %v623
    %s626 = scalar_lea.vmem [#allocation4], 16
    %627 = vst.msk [vmem:[%s626] sm:$0xff] %vm291, %v624
    %628 = vst.msk [vmem:[%s626 + $0x8] sm:$0xff] %vm291, %v625
    %v629 = vpack.c.bf16 %v624, %v624
    %v630 = vpack.c.bf16 %v625, %v625
    %631 = vrot.lane.b32.xlu0 %v279, 120
    %v632 = vpop.permute.xlu0 %631
    %v634 = vsel %vm291, %v629, 0
    %v637 = vsel %vm413, %v632, 0
    %639 = vmatprep.subr.bf16.mxu0 0
    %640 = vmatpush1.bf16.msra.mxu0 0
    %641 = vmatprep.subr.bf16.mxu0 0
    %642 = vmatpush1.bf16.msra.mxu0 0
    %643 = vmatprep.subr.bf16.mxu0 0
    %644 = vmatpush1.bf16.msra.mxu0 0
    %645 = vmatprep.subr.bf16.mxu0 0
    %646 = vmatpush1.bf16.msra.mxu0 0
    %647 = vmatprep.subr.bf16.mxu0 0
    %648 = vmatpush1.bf16.msra.mxu0 0
    %649 = vmatprep.subr.bf16.mxu0 0
    %650 = vmatpush1.bf16.msra.mxu0 0
    %651 = vmatprep.subr.bf16.mxu0 0
    %652 = vmatpush1.bf16.msra.mxu0 0
    %653 = vmatprep.subr.bf16.mxu0 0
    %654 = vmatpush1.bf16.msra.mxu0 %v637
    %655 = vmatprep.subr.bf16.mxu0 0
    %656 = vmatpush2.bf16.msra.mxu0 0
    %657 = vmatprep.subr.bf16.mxu0 0
    %658 = vmatpush2.bf16.msra.mxu0 0
    %659 = vmatprep.subr.bf16.mxu0 0
    %660 = vmatpush2.bf16.msra.mxu0 0
    %661 = vmatprep.subr.bf16.mxu0 0
    %662 = vmatpush2.bf16.msra.mxu0 0
    %663 = vmatprep.subr.bf16.mxu0 0
    %664 = vmatpush2.bf16.msra.mxu0 0
    %665 = vmatprep.subr.bf16.mxu0 0
    %666 = vmatpush2.bf16.msra.mxu0 0
    %667 = vmatprep.subr.bf16.mxu0 0
    %668 = vmatpush2.bf16.msra.mxu0 0
    %669 = vmatprep.subr.bf16.mxu0 0
    %670 = vmatpush2.bf16.msra.mxu0 0
    %671 = vmatprep.mubr.bf16.mxu0 0
    %672 = vmatmul.mubr.bf16.gmra.mxu0 %v634
    %v673 = vpop.f32.mrf.mxu0
    %v674 = vadd.f32 0.0, %v673
    %v675 = vpop.f32.mrf.mxu0
    %v676 = vpop.f32.mrf.mxu0
    %v677 = vpop.f32.mrf.mxu0
    %678 = vdwg.mxu0
    %679 = vrot.lane.b32.xlu0 %v280, 120
    %v680 = vpop.permute.xlu0 %679
    %v682 = vsel %vm291, %v630, 0
    %v685 = vsel %vm413, %v680, 0
    %687 = vmatprep.subr.bf16.mxu0 0
    %688 = vmatpush1.bf16.msra.mxu0 0
    %689 = vmatprep.subr.bf16.mxu0 0
    %690 = vmatpush1.bf16.msra.mxu0 0
    %691 = vmatprep.subr.bf16.mxu0 0
    %692 = vmatpush1.bf16.msra.mxu0 0
    %693 = vmatprep.subr.bf16.mxu0 0
    %694 = vmatpush1.bf16.msra.mxu0 0
    %695 = vmatprep.subr.bf16.mxu0 0
    %696 = vmatpush1.bf16.msra.mxu0 0
    %697 = vmatprep.subr.bf16.mxu0 0
    %698 = vmatpush1.bf16.msra.mxu0 0
    %699 = vmatprep.subr.bf16.mxu0 0
    %700 = vmatpush1.bf16.msra.mxu0 0
    %701 = vmatprep.subr.bf16.mxu0 0
    %702 = vmatpush1.bf16.msra.mxu0 %v685
    %703 = vmatprep.subr.bf16.mxu0 0
    %704 = vmatpush2.bf16.msra.mxu0 0
    %705 = vmatprep.subr.bf16.mxu0 0
    %706 = vmatpush2.bf16.msra.mxu0 0
    %707 = vmatprep.subr.bf16.mxu0 0
    %708 = vmatpush2.bf16.msra.mxu0 0
    %709 = vmatprep.subr.bf16.mxu0 0
    %710 = vmatpush2.bf16.msra.mxu0 0
    %711 = vmatprep.subr.bf16.mxu0 0
    %712 = vmatpush2.bf16.msra.mxu0 0
    %713 = vmatprep.subr.bf16.mxu0 0
    %714 = vmatpush2.bf16.msra.mxu0 0
    %715 = vmatprep.subr.bf16.mxu0 0
    %716 = vmatpush2.bf16.msra.mxu0 0
    %717 = vmatprep.subr.bf16.mxu0 0
    %718 = vmatpush2.bf16.msra.mxu0 0
    %719 = vmatprep.mubr.bf16.mxu0 0
    %720 = vmatmul.mubr.bf16.gmra.mxu0 %v682
    %v721 = vpop.f32.mrf.mxu0
    %v722 = vadd.f32 0.0, %v721
    %v723 = vpop.f32.mrf.mxu0
    %v724 = vpop.f32.mrf.mxu0
    %v725 = vpop.f32.mrf.mxu0
    %726 = vdwg.mxu0
    %v727 = vpack.c.bf16 %v722, %v674
    %v729 = vsel %vm291, %v727, 0
    %v732 = vsel %vm413, %v290, 0
    %734 = vmatprep.subr.bf16.mxu0 0
    %735 = vmatpush1.bf16.msra.mxu0 0
    %736 = vmatprep.subr.bf16.mxu0 0
    %737 = vmatpush1.bf16.msra.mxu0 0
    %738 = vmatprep.subr.bf16.mxu0 0
    %739 = vmatpush1.bf16.msra.mxu0 0
    %740 = vmatprep.subr.bf16.mxu0 0
    %741 = vmatpush1.bf16.msra.mxu0 0
    %742 = vmatprep.subr.bf16.mxu0 0
    %743 = vmatpush1.bf16.msra.mxu0 0
    %744 = vmatprep.subr.bf16.mxu0 0
    %745 = vmatpush1.bf16.msra.mxu0 0
    %746 = vmatprep.subr.bf16.mxu0 0
    %747 = vmatpush1.bf16.msra.mxu0 0
    %748 = vmatprep.subr.bf16.mxu0 0
    %749 = vmatpush1.bf16.msra.mxu0 %v732
    %750 = vmatprep.subr.bf16.mxu0 0
    %751 = vmatpush2.bf16.msra.mxu0 0
    %752 = vmatprep.subr.bf16.mxu0 0
    %753 = vmatpush2.bf16.msra.mxu0 0
    %754 = vmatprep.subr.bf16.mxu0 0
    %755 = vmatpush2.bf16.msra.mxu0 0
    %756 = vmatprep.subr.bf16.mxu0 0
    %757 = vmatpush2.bf16.msra.mxu0 0
    %758 = vmatprep.subr.bf16.mxu0 0
    %759 = vmatpush2.bf16.msra.mxu0 0
    %760 = vmatprep.subr.bf16.mxu0 0
    %761 = vmatpush2.bf16.msra.mxu0 0
    %762 = vmatprep.subr.bf16.mxu0 0
    %763 = vmatpush2.bf16.msra.mxu0 0
    %764 = vmatprep.subr.bf16.mxu0 0
    %765 = vmatpush2.bf16.msra.mxu0 0
    %766 = vmatprep.mubr.bf16.mxu0 0
    %767 = vmatmul.mubr.bf16.gmra.mxu0 %v729
    %v768 = vpop.f32.mrf.mxu0
    %v769 = vadd.f32 0.0, %v768
    %v770 = vpop.f32.mrf.mxu0
    %v771 = vpop.f32.mrf.mxu0
    %v772 = vadd.f32 0.0, %v771
    %v773 = vpop.f32.mrf.mxu0
    %774 = vdwg.mxu0
    %v776 = vsel %vm291, %v503, 0
    %v779 = vsel %vm413, %v289, 0
    %781 = vmatprep.subr.bf16.mxu0 0
    %782 = vmatpush1.bf16.msra.mxu0 0
    %783 = vmatprep.subr.bf16.mxu0 0
    %784 = vmatpush1.bf16.msra.mxu0 0
    %785 = vmatprep.subr.bf16.mxu0 0
    %786 = vmatpush1.bf16.msra.mxu0 0
    %787 = vmatprep.subr.bf16.mxu0 0
    %788 = vmatpush1.bf16.msra.mxu0 0
    %789 = vmatprep.subr.bf16.mxu0 0
    %790 = vmatpush1.bf16.msra.mxu0 0
    %791 = vmatprep.subr.bf16.mxu0 0
    %792 = vmatpush1.bf16.msra.mxu0 0
    %793 = vmatprep.subr.bf16.mxu0 0
    %794 = vmatpush1.bf16.msra.mxu0 0
    %795 = vmatprep.subr.bf16.mxu0 0
    %796 = vmatpush1.bf16.msra.mxu0 %v779
    %797 = vmatprep.subr.bf16.mxu0 0
    %798 = vmatpush2.bf16.msra.mxu0 0
    %799 = vmatprep.subr.bf16.mxu0 0
    %800 = vmatpush2.bf16.msra.mxu0 0
    %801 = vmatprep.subr.bf16.mxu0 0
    %802 = vmatpush2.bf16.msra.mxu0 0
    %803 = vmatprep.subr.bf16.mxu0 0
    %804 = vmatpush2.bf16.msra.mxu0 0
    %805 = vmatprep.subr.bf16.mxu0 0
    %806 = vmatpush2.bf16.msra.mxu0 0
    %807 = vmatprep.subr.bf16.mxu0 0
    %808 = vmatpush2.bf16.msra.mxu0 0
    %809 = vmatprep.subr.bf16.mxu0 0
    %810 = vmatpush2.bf16.msra.mxu0 0
    %811 = vmatprep.subr.bf16.mxu0 0
    %812 = vmatpush2.bf16.msra.mxu0 0
    %813 = vmatprep.mubr.bf16.mxu0 0
    %814 = vmatmul.mubr.bf16.gmra.mxu0 %v776
    %v815 = vpop.f32.mrf.mxu0
    %v816 = vadd.f32 %v769, %v815
    %v817 = vpop.f32.mrf.mxu0
    %v818 = vpop.f32.mrf.mxu0
    %v819 = vadd.f32 %v772, %v818
    %v820 = vpop.f32.mrf.mxu0
    %821 = vdwg.mxu0
    %v822 = vld [vmem:[%s11] sm:$0x1]
    %v824 = vlaneseq
    %v825 = vshrl.u32 %v824, 7
    %v826 = vsub.s32 0, %v825
    %v827 = vrot.slane %v822, %v826
    %v829 = vadd.f32 %v816, %v827
    %v830 = vadd.f32 %v819, %v827
    %v831 = vadd.f32 %v829, %v52
    %v832 = vadd.f32 %v830, %v53
    %v833 = vsel %vm84, %v831, 0.0
    %834 = vadd.xlane.f32.xlu0 %v833
    %v835 = vpop.xlane.xlu0 %834
    %v836 = vsel %vm84, %v832, 0.0
    %837 = vadd.xlane.f32.xlu0 %v836
    %v838 = vpop.xlane.xlu0 %837
    %v839 = vrcp.pop 32.0
    %v840 = vmul.f32 %v835, %v839
    %v841 = vmul.f32 %v838, %v839
    %v842 = vsub.f32 %v831, %v840
    %v843 = vsub.f32 %v832, %v841
    %v844 = vmul.f32 %v842, %v842
    %v845 = vmul.f32 %v843, %v843
    %v846 = vsel %vm84, %v844, 0.0
    %847 = vadd.xlane.f32.xlu0 %v846
    %v848 = vpop.xlane.xlu0 %847
    %v849 = vsel %vm84, %v845, 0.0
    %850 = vadd.xlane.f32.xlu0 %v849
    %v851 = vpop.xlane.xlu0 %850
    %v852 = vmul.f32 %v848, %v839
    %v853 = vmul.f32 %v851, %v839
    %v854 = vadd.f32 %v852, 1e-05
    %v855 = vadd.f32 %v853, 1e-05
    %v856 = vrsqrt.pop %v854
    %v857 = vrsqrt.pop %v855
    %v858 = vmul.f32 %v842, %v856
    %v859 = vmul.f32 %v843, %v857
    %v860 = vld [vmem:[%s12] sm:$0x1]
    %v862 = vlaneseq
    %v863 = vshrl.u32 %v862, 7
    %v864 = vsub.s32 0, %v863
    %v865 = vrot.slane %v860, %v864
    %v867 = vmul.f32 %v858, %v865
    %v868 = vmul.f32 %v859, %v865
    %v869 = vld [vmem:[%s13] sm:$0x1]
    %v871 = vlaneseq
    %v872 = vshrl.u32 %v871, 7
    %v873 = vsub.s32 0, %v872
    %v874 = vrot.slane %v869, %v873
    %v876 = vadd.f32 %v867, %v874
    %v877 = vadd.f32 %v868, %v874
    %878 = vst.msk [vmem:[#allocation2] sm:$0xff] %vm84, %v876
    %879 = vst.msk [vmem:[#allocation2 + $0x8] sm:$0xff] %vm84, %v877
    // Predicated region
    $region58: #{tpu_custom_call.1} parent=1 // pred_check
      _
    $region59: #{tpu_custom_call.1} parent=1 // pred_check_branch
      %881 = sbr.rel (0) target = $region61
    $region60: #{tpu_custom_call.1} parent=1 // pred_region
      %s883 = ssub.s32 256, 256
      %884 = vsyncadd [#allocation3], %s883
      %s885 = sshll.u32 [#allocation2], 4
      %s886 = int_to_ptr.vmem [resolvable:$true] %s885
      %891 = dma.vmem_to_hbm [thread:$0]  %s886, 256, %s14, [#allocation3], 128, 128, 8
    $region61: #{tpu_custom_call.1} parent=1 // pred_fallthru
      _
    // Predicated region
    $region62: #{tpu_custom_call.1} parent=1 // pred_check
      _
    $region63: #{tpu_custom_call.1} parent=1 // pred_check_branch
      %893 = sbr.rel (0) target = $region65
    $region64: #{tpu_custom_call.1} parent=1 // pred_region
      %s895 = ssub.s32 512, 512
      %896 = vsyncadd [#allocation5], %s895
      %s897 = sshll.u32 [#allocation4], 4
      %s898 = int_to_ptr.vmem [resolvable:$true] %s897
      %903 = dma.vmem_to_hbm [thread:$0]  %s898, 512, %s15, [#allocation5], 128, 128, 8
    $region65: #{tpu_custom_call.1} parent=1 // pred_fallthru
      _
    // Predicated region
    $region66: #{tpu_custom_call.1} parent=1 // pred_check
      _
    $region67: #{tpu_custom_call.1} parent=1 // pred_check_branch
      %905 = sbr.rel (0) target = $region69
    $region68: #{tpu_custom_call.1} parent=1 // pred_region
      %906 = dma.done [#allocation3], 256
    $region69: #{tpu_custom_call.1} parent=1 // pred_fallthru
      _
    // Predicated region
    $region70: #{tpu_custom_call.1} parent=1 // pred_check
      _
    $region71: #{tpu_custom_call.1} parent=1 // pred_check_branch
      %908 = sbr.rel (0) target = $region73
    $region72: #{tpu_custom_call.1} parent=1 // pred_region
      %909 = dma.done [#allocation5], 512
    $region73: #{tpu_custom_call.1} parent=1 // pred_fallthru
      _
    %910 = vsyncpa [#allocation3], 1
    %911 = vsyncpa [#allocation5], 1

</llo_original>
